<compile_context>
chip_gen: v7x
topology: tpu7x:2x2x1
jax: 0.10.0
libtpu: 0.0.40
codegen_flags: <defaults>
</compile_context>

<pallas_src>
import functools
import math

import jax
import jax.numpy as jnp
from jax.experimental import pallas as pl
from jax.experimental.pallas import tpu as pltpu

_EPS = 1e-5


# ------------------------------ kernels --------------------------------------
def _channel_stats_kernel(x_ref, st_ref):
    """Per-tile per-channel sum and sum-of-squares (single streaming pass)."""
    C = x_ref.shape[-1]
    x = x_ref[...].astype(jnp.float32).reshape(-1, C)
    st_ref[:, 0:1, :] = jnp.sum(x, axis=0, keepdims=True)[None]
    st_ref[:, 1:2, :] = jnp.sum(x * x, axis=0, keepdims=True)[None]


def _im2col_3x3(h, pad_ref, col_ref, H, W, C):
    """Scatter h=(tn,H,W,C) into a zero-halo padded scratch (only the 1-pixel
    halo is zeroed; the interior is fully overwritten) and lay the 9 conv taps
    into the first 9*C columns of col_ref (im2col)."""
    tn = h.shape[0]
    dt = pad_ref.dtype
    zr = jnp.zeros((tn, 1, W + 2, C), dt)
    zc = jnp.zeros((tn, H + 2, 1, C), dt)
    pad_ref[:, 0:1, :, :] = zr
    pad_ref[:, H + 1:H + 2, :, :] = zr
    pad_ref[:, :, 0:1, :] = zc
    pad_ref[:, :, W + 1:W + 2, :] = zc
    pad_ref[:, 1:H + 1, 1:W + 1, :] = h.astype(dt)
    for kh in range(3):
        for kw in range(3):
            idx = kh * 3 + kw
            col_ref[:, :, :, idx * C:(idx + 1) * C] = \
                pad_ref[:, kh:kh + H, kw:kw + W, :]


def _bnrelu_conv1_kernel(x_ref, s1_ref, t1_ref, w1_ref, b1_ref,
                         y_ref, st_ref, pad_ref, col_ref,
                         *, H, W, Cin, Cout):
    tn = x_ref.shape[0]
    M = tn * H * W
    x2d = x_ref[...].astype(jnp.float32).reshape(M, Cin)
    # BN1 folded to a single FMA (scale/shift precomputed from batch stats) + ReLU
    h = jnp.maximum(x2d * s1_ref[...] + t1_ref[...], 0.0)
    _im2col_3x3(h.reshape(tn, H, W, Cin), pad_ref, col_ref, H, W, Cin)
    patches = col_ref[...].reshape(M, 9 * Cin)
    acc = jnp.dot(patches, w1_ref[...], preferred_element_type=jnp.float32)
    acc = acc + b1_ref[...]                           # bias as a (1,Cout) row add
    y_ref[...] = acc.reshape(tn, H, W, Cout).astype(y_ref.dtype)
    # per-tile partial stats of the conv1 output (for BN2), reduced in wrapper
    st_ref[:, 0:1, :] = jnp.sum(acc, axis=0, keepdims=True)[None]
    st_ref[:, 1:2, :] = jnp.sum(acc * acc, axis=0, keepdims=True)[None]


def _bnrelu_conv2_shortcut_kernel(y_ref, x_ref, s2_ref, t2_ref, w_ref, b_ref,
                                  out_ref, pad_ref, col_ref,
                                  *, H, W, Cin, Cout):
    tn = y_ref.shape[0]
    M = tn * H * W
    y2d = y_ref[...].astype(jnp.float32).reshape(M, Cout)
    h = jnp.maximum(y2d * s2_ref[...] + t2_ref[...], 0.0)
    _im2col_3x3(h.reshape(tn, H, W, Cout), pad_ref, col_ref, H, W, Cout)
    # fused 1x1 shortcut: raw-input channels appended as extra im2col columns,
    # so conv2 + shortcut is ONE MXU matmul with K = 9*Cout + Cin.
    col_ref[:, :, :, 9 * Cout:9 * Cout + Cin] = x_ref[...].astype(col_ref.dtype)
    patches = col_ref[...].reshape(M, 9 * Cout + Cin)
    acc = jnp.dot(patches, w_ref[...], preferred_element_type=jnp.float32)
    acc = acc + b_ref[...]                            # both biases: one row add
    out_ref[...] = acc.reshape(tn, H, W, Cout).astype(out_ref.dtype)


# ------------------------------ wrapper ---------------------------------------
def _bytes(*shape_dtypes):
    return sum(math.prod(s) * jnp.dtype(d).itemsize for s, d in shape_dtypes)


def _compiler_params(block_bytes, scratch_bytes):
    # inputs/outputs double-buffered by the pipeline + resident scratch + headroom
    need = 2 * block_bytes + scratch_bytes + (2 << 20)
    limit = int(min(max(need, 16 << 20), 64 << 20))   # stay under v7x's 64 MiB VMEM
    return pltpu.CompilerParams(dimension_semantics=("parallel",),
                                vmem_limit_bytes=limit)


def res_block_forward(x_nchw, params, *, stride=1, matmul_dtype=jnp.float32):
    """Forward pass of res_block. NCHW in / NCHW out (PyTorch convention).

    matmul_dtype: set to jnp.bfloat16 on v6e/v7x for full-rate MXU at real
    channel counts (f32 default keeps parity with the f32 PyTorch reference).
    """
    assert stride == 1, "only stride=1 supported"
    N, Cin, H, W = map(int, x_nchw.shape)
    Cout = int(params["c1b"].shape[0])
    eps = _EPS

    x = jnp.transpose(x_nchw, (0, 2, 3, 1)).astype(jnp.float32)            # NHWC
    # 3x3 weights as im2col matrices with (kh, kw, ci) row order
    w1m = jnp.transpose(params["w1"], (2, 3, 1, 0)).reshape(9 * Cin, Cout).astype(matmul_dtype)
    w2m = jnp.transpose(params["w2"], (2, 3, 1, 0)).reshape(9 * Cout, Cout).astype(matmul_dtype)
    wsm = params["ws"][:, :, 0, 0].T.astype(matmul_dtype)                  # (Cin, Cout)
    w23 = jnp.concatenate([w2m, wsm], axis=0)        # fused conv2 + shortcut weight
    row = lambda v: v.reshape(1, -1).astype(jnp.float32)
    b23 = row(params["c2b"]) + row(params["sb"])     # fused conv2 + shortcut bias

    grid = (N,)          # one image per grid step: independent tiles, no halo
    cnt = float(N * H * W)

    def fold_bn(sums, gamma, beta):
        mu = sums[0] / cnt
        var = jnp.maximum(sums[1] / cnt - mu * mu, 0.0)      # biased variance
        scale = gamma.astype(jnp.float32) * jax.lax.rsqrt(var + eps)
        shift = beta.astype(jnp.float32) - mu * scale
        return scale.reshape(1, -1), shift.reshape(1, -1)

    # ---- pass 1: BN1 batch statistics of x -----------------------------------
    st1 = pl.pallas_call(
        _channel_stats_kernel,
        grid=grid,
        in_specs=[pl.BlockSpec((1, H, W, Cin), lambda i: (i, 0, 0, 0))],
        out_specs=pl.BlockSpec((1, 2, Cin), lambda i: (i, 0, 0)),
        out_shape=jax.ShapeDtypeStruct((N, 2, Cin), jnp.float32),
        compiler_params=_compiler_params(
            _bytes(((1, H, W, Cin), jnp.float32), ((1, 2, Cin), jnp.float32)), 0),
    )(x)
    scale1, shift1 = fold_bn(jnp.sum(st1, axis=0), params["g1"], params["b1"])

    # ---- pass 2: BN1+ReLU -> conv1 (single im2col matmul) + BN2 partial stats -
    conv1 = functools.partial(_bnrelu_conv1_kernel, H=H, W=W, Cin=Cin, Cout=Cout)
    y1, st2 = pl.pallas_call(
        conv1,
        grid=grid,
        in_specs=[pl.BlockSpec((1, H, W, Cin), lambda i: (i, 0, 0, 0)),
                  pl.BlockSpec((1, Cin), lambda i: (0, 0)),
                  pl.BlockSpec((1, Cin), lambda i: (0, 0)),
                  pl.BlockSpec((9 * Cin, Cout), lambda i: (0, 0)),
                  pl.BlockSpec((1, Cout), lambda i: (0, 0))],
        out_specs=(pl.BlockSpec((1, H, W, Cout), lambda i: (i, 0, 0, 0)),
                   pl.BlockSpec((1, 2, Cout), lambda i: (i, 0, 0))),
        out_shape=(jax.ShapeDtypeStruct((N, H, W, Cout), jnp.float32),
                   jax.ShapeDtypeStruct((N, 2, Cout), jnp.float32)),
        scratch_shapes=[pltpu.VMEM((1, H + 2, W + 2, Cin), matmul_dtype),
                        pltpu.VMEM((1, H, W, 9 * Cin), matmul_dtype)],
        compiler_params=_compiler_params(
            _bytes(((1, H, W, Cin), jnp.float32),
                   ((9 * Cin, Cout), matmul_dtype),
                   ((1, H, W, Cout), jnp.float32),
                   ((1, 2, Cout), jnp.float32)),
            _bytes(((1, H + 2, W + 2, Cin), matmul_dtype),
                   ((1, H, W, 9 * Cin), matmul_dtype))),
    )(x, scale1, shift1, w1m, row(params["c1b"]))
    scale2, shift2 = fold_bn(jnp.sum(st2, axis=0), params["g2"], params["b2"])

    # ---- pass 3: BN2+ReLU -> conv2 + 1x1 shortcut fused into ONE matmul -------
    conv2 = functools.partial(_bnrelu_conv2_shortcut_kernel,
                              H=H, W=W, Cin=Cin, Cout=Cout)
    Kf = 9 * Cout + Cin
    out_nhwc = pl.pallas_call(
        conv2,
        grid=grid,
        in_specs=[pl.BlockSpec((1, H, W, Cout), lambda i: (i, 0, 0, 0)),
                  pl.BlockSpec((1, H, W, Cin), lambda i: (i, 0, 0, 0)),
                  pl.BlockSpec((1, Cout), lambda i: (0, 0)),
                  pl.BlockSpec((1, Cout), lambda i: (0, 0)),
                  pl.BlockSpec((Kf, Cout), lambda i: (0, 0)),
                  pl.BlockSpec((1, Cout), lambda i: (0, 0))],
        out_specs=pl.BlockSpec((1, H, W, Cout), lambda i: (i, 0, 0, 0)),
        out_shape=jax.ShapeDtypeStruct((N, H, W, Cout), jnp.float32),
        scratch_shapes=[pltpu.VMEM((1, H + 2, W + 2, Cout), matmul_dtype),
                        pltpu.VMEM((1, H, W, Kf), matmul_dtype)],
        compiler_params=_compiler_params(
            _bytes(((1, H, W, Cout), jnp.float32),
                   ((1, H, W, Cin), jnp.float32),
                   ((Kf, Cout), matmul_dtype),
                   ((1, H, W, Cout), jnp.float32)),
            _bytes(((1, H + 2, W + 2, Cout), matmul_dtype),
                   ((1, H, W, Kf), matmul_dtype))),
    )(y1, x, scale2, shift2, w23, b23)

    return jnp.transpose(out_nhwc, (0, 3, 1, 2))   # back to NCHW


# -------------------------- pure-JAX reference -------------------------------
def _res_block_ref(x_nchw, p, eps=_EPS):
    x = jnp.transpose(x_nchw, (0, 2, 3, 1)).astype(jnp.float32)

    def bn_relu(v, g, b):
        mu = jnp.mean(v, axis=(0, 1, 2))
        var = jnp.mean((v - mu) ** 2, axis=(0, 1, 2))
        return jnp.maximum((v - mu) * jax.lax.rsqrt(var + eps) * g + b, 0.0)

    def conv(v, w_oihw, b, pad):
        w = jnp.transpose(w_oihw, (2, 3, 1, 0)).astype(jnp.float32)
        y = jax.lax.conv_general_dilated(
            v, w, (1, 1), [(pad, pad), (pad, pad)],
            dimension_numbers=("NHWC", "HWIO", "NHWC"))
        return y + b

    h = bn_relu(x, p["g1"], p["b1"])
    h = conv(h, p["w1"], p["c1b"], 1)
    h = bn_relu(h, p["g2"], p["b2"])
    h = conv(h, p["w2"], p["c2b"], 1)
    s = conv(x, p["ws"], p["sb"], 0)
    return jnp.transpose(h + s, (0, 3, 1, 2))


if __name__ == "__main__":
    key = jax.random.PRNGKey(0)
    ks = jax.random.split(key, 12)

    N, Cin, H, W = 2, 4, 16, 16
    Cout = 8

    x = jax.random.normal(ks[0], (N, Cin, H, W), jnp.float32)

    params = {
        # BatchNorm2d(in_c): weight (gamma), bias (beta)
        "g1": 1.0 + 0.1 * jax.random.normal(ks[1], (Cin,), jnp.float32),
        "b1": 0.1 * jax.random.normal(ks[2], (Cin,), jnp.float32),
        # Conv2d(in_c, out_c, 3, padding=1): OIHW weight + bias
        "w1": 0.2 * jax.random.normal(ks[3], (Cout, Cin, 3, 3), jnp.float32),
        "c1b": 0.1 * jax.random.normal(ks[4], (Cout,), jnp.float32),
        # BatchNorm2d(out_c)
        "g2": 1.0 + 0.1 * jax.random.normal(ks[5], (Cout,), jnp.float32),
        "b2": 0.1 * jax.random.normal(ks[6], (Cout,), jnp.float32),
        # Conv2d(out_c, out_c, 3, padding=1)
        "w2": 0.2 * jax.random.normal(ks[7], (Cout, Cout, 3, 3), jnp.float32),
        "c2b": 0.1 * jax.random.normal(ks[8], (Cout,), jnp.float32),
        # Shortcut Conv2d(in_c, out_c, 1)
        "ws": 0.2 * jax.random.normal(ks[9], (Cout, Cin, 1, 1), jnp.float32),
        "sb": 0.1 * jax.random.normal(ks[10], (Cout,), jnp.float32),
    }

    out = jax.block_until_ready(res_block_forward(x, params))
    ref = jax.block_until_ready(_res_block_ref(x, params))

    if out.shape != (N, Cout, H, W):
        raise RuntimeError(f"bad output shape {out.shape}")
    if not jnp.allclose(out, ref, atol=1e-3, rtol=1e-3):
        err = float(jnp.max(jnp.abs(out - ref)))
        raise RuntimeError(f"Pallas kernel does not match JAX reference (max err {err})")

    print("KERNEL_OK")
</pallas_src>

<mosaic_0001>
module attributes {stable_mosaic.version = 11 : i64} {
  func.func @_channel_stats_kernel(%arg0: i32, %arg1: memref<1x16x16x4xf32, #tpu.memory_space<vmem>>, %arg2: memref<1x2x4xf32, #tpu.memory_space<vmem>>) attributes {dimension_semantics = [#tpu.dimension_semantics<parallel>], iteration_bounds = array<i64: 2>, scalar_prefetch = 0 : i64, scratch_operands = 0 : i64, tpu.core_type = #tpu.core_type<tc>, window_params = [{transform_indices = @transform_0, window_bounds = array<i64: 1, 16, 16, 4>}, {transform_indices = @transform_1, window_bounds = array<i64: 1, 2, 4>}]} {
    %c0 = arith.constant 0 : index
    %c0_0 = arith.constant 0 : index
    %c0_1 = arith.constant 0 : index
    %c0_2 = arith.constant 0 : index
    %0 = vector.load %arg1[%c0, %c0_0, %c0_1, %c0_2] : memref<1x16x16x4xf32, #tpu.memory_space<vmem>>, vector<1x16x16x4xf32>
    %1 = vector.shape_cast %0 : vector<1x16x16x4xf32> to vector<256x4xf32>
    %cst = arith.constant dense<0.000000e+00> : vector<4xf32>
    %2 = vector.multi_reduction <add>, %1, %cst [0] : vector<256x4xf32> to vector<4xf32>
    %3 = vector.shape_cast %2 : vector<4xf32> to vector<1x4xf32>
    %4 = vector.shape_cast %3 : vector<1x4xf32> to vector<1x1x4xf32>
    %c0_3 = arith.constant 0 : index
    %c0_4 = arith.constant 0 : index
    %c0_5 = arith.constant 0 : index
    %5 = vector.load %arg2[%c0_3, %c0_4, %c0_5] : memref<1x2x4xf32, #tpu.memory_space<vmem>>, vector<1x1x4xf32>
    tpu.vector_store %arg2[%c0_3, %c0_4, %c0_5], %4 {strides = array<i32>} : memref<1x2x4xf32, #tpu.memory_space<vmem>>, vector<1x1x4xf32>,
    %6 = arith.mulf %1, %1 : vector<256x4xf32>
    %cst_6 = arith.constant dense<0.000000e+00> : vector<4xf32>
    %7 = vector.multi_reduction <add>, %6, %cst_6 [0] : vector<256x4xf32> to vector<4xf32>
    %8 = vector.shape_cast %7 : vector<4xf32> to vector<1x4xf32>
    %9 = vector.shape_cast %8 : vector<1x4xf32> to vector<1x1x4xf32>
    %c0_7 = arith.constant 0 : index
    %c1 = arith.constant 1 : index
    %c0_8 = arith.constant 0 : index
    %10 = vector.load %arg2[%c0_7, %c1, %c0_8] : memref<1x2x4xf32, #tpu.memory_space<vmem>>, vector<1x1x4xf32>
    tpu.vector_store %arg2[%c0_7, %c1, %c0_8], %9 {strides = array<i32>} : memref<1x2x4xf32, #tpu.memory_space<vmem>>, vector<1x1x4xf32>,
    return
  }
  func.func @transform_0(%arg0: i32) -> (i32, i32, i32, i32) {
    %c0_i32 = arith.constant 0 : i32
    %c0_i32_0 = arith.constant 0 : i32
    %c0_i32_1 = arith.constant 0 : i32
    %c0_i32_2 = arith.constant 0 : i32
    return %arg0, %c0_i32, %c0_i32_0, %c0_i32_1 : i32, i32, i32, i32
  }
  func.func @transform_1(%arg0: i32) -> (i32, i32, i32) {
    %c0_i32 = arith.constant 0 : i32
    %c0_i32_0 = arith.constant 0 : i32
    %c0_i32_1 = arith.constant 0 : i32
    return %arg0, %c0_i32, %c0_i32_0 : i32, i32, i32
  }
}

</mosaic_0001>

<llo_original>
// kernel: tpu_custom_call.1
$region0: #{tpu_custom_call.1}
  #allocation0 [shape = 'u32[]', space=smem, size = 0x4, offset = 0x4, fixed_abs, tag = 'smem constant byte address 0x4 - core index']
  #allocation1 [shape = 'u32[144,128]{1,0:T(1,128)}', space=vmem, size = 0x12000, scoped, tag = 'internal scratch']
  %s0 = inlined_call_operand.vmem [shape: f32[2,16,16,4], index: 0, kind: input, shape index: {}]
  %s1 = inlined_call_operand.hbm [shape: f32[2,2,4], index: 1, kind: output, shape index: {}]
  %s2 = sld [smem:[#allocation0]]
  $region37: #{tpu_custom_call.1} parent=0
    _
  %s4 = ssub.s32 1, %s2
  %s5 = scalar_select 0, %s4, %s2
  $region1: #{tpu_custom_call.1} parent=0
    #allocation2 [shape = 'u8[2048]{0}', space=vmem, size = 0x800, scoped, tag = 'output window, operand 0']
    #allocation3 [shape = 's32[2]{0}', space=sflag, size = 0x8, scoped, tag = 'scoped memory for tpu_custom_call.1']
    %6 = vsyncpa [#allocation3], 0
    %s7 = scalar_lea.sflag [#allocation3], 1
    %8 = vsyncpa %s7, 0
    loop: start=0, step=1, limit=4
    $region2: #{tpu_custom_call.1} parent=1 // loop_pre_header
      _
    $region3: #{tpu_custom_call.1} parent=1 // loop_header
      %s10 = sphi 0, %s14
      %p11 = scmp.ge.s32.totalorder %s10, 4
      %s20 = sphi 0, %s22
      %s23 = sphi 0, %s20
      %s24 = sphi 0, %s23
      %s40 = sphi 0, %s24
      %s46 = sphi 0, %s48
      %s49 = sphi 0, %s46
      %s50 = sphi 0, %s49
      %s66 = sphi 0, %s50
    $region4: #{tpu_custom_call.1} parent=1 // loop_header_branch
      %13 = sbr.rel (%p11) target = $region8
    $region5: #{tpu_custom_call.1} parent=1 // loop_body
      %s15 = ssub.s32 %s10, 1
      %s16 = ssub.s32 %s10, 2
      %s17 = sadd.s32 %s10, 1
      %s18 = ssub.s32 %s10, %s17
      %p19 = scmp.eq.s32.totalorder %s18, 0
      %s21 = sadd.s32 %s20, 1
      %s22 = scalar_select %p19, %s20, %s21
      %p25 = pneg %p19
      %p26 = scmp.eq.s32.totalorder %s10, 1
      %p27 = por %p25, %p26
      %p28 = scmp.ne.s32.totalorder %s20, %s23
      %p29 = scmp.eq.s32.totalorder %s10, 0
      %p30 = por %p28, %p29
      %p31 = scmp.ne.s32.totalorder %s20, %s23
      %p32 = scmp.eq.s32.totalorder %s15, 1
      %p33 = por %p31, %p32
      %p34 = scmp.ne.s32.totalorder %s23, %s24
      %p35 = scmp.eq.s32.totalorder %s15, 0
      %p36 = por %p34, %p35
      %p37 = scmp.ne.s32.totalorder %s23, %s24
      %p38 = scmp.eq.s32.totalorder %s16, 1
      %p39 = por %p37, %p38
      %p41 = scmp.ne.s32.totalorder %s24, %s40
      %p42 = scmp.eq.s32.totalorder %s16, 0
      %p43 = por %p41, %p42
      %s44 = ssub.s32 %s10, %s17
      %p45 = scmp.eq.s32.totalorder %s44, 0
      %s47 = sadd.s32 %s46, 1
      %s48 = scalar_select %p45, %s46, %s47
      %p51 = pneg %p45
      %p52 = scmp.eq.s32.totalorder %s10, 1
      %p53 = por %p51, %p52
      %p54 = scmp.ne.s32.totalorder %s46, %s49
      %p55 = scmp.eq.s32.totalorder %s10, 0
      %p56 = por %p54, %p55
      %p57 = scmp.ne.s32.totalorder %s46, %s49
      %p58 = scmp.eq.s32.totalorder %s15, 1
      %p59 = por %p57, %p58
      %p60 = scmp.ne.s32.totalorder %s49, %s50
      %p61 = scmp.eq.s32.totalorder %s15, 0
      %p62 = por %p60, %p61
      %p63 = scmp.ne.s32.totalorder %s49, %s50
      %p64 = scmp.eq.s32.totalorder %s16, 1
      %p65 = por %p63, %p64
      %p67 = scmp.ne.s32.totalorder %s50, %s66
      %p68 = scmp.eq.s32.totalorder %s16, 0
      %p69 = por %p67, %p68
      %p70 = scmp.le.s32.totalorder 1, %s10
      %p71 = scmp.lt.s32.totalorder %s10, 3
      %p72 = pnand %p70, %p71
      %p73 = pneg %p72
      // Predicated region
      $region9: #{tpu_custom_call.1} parent=5 // pred_check
        _
      $region10: #{tpu_custom_call.1} parent=5 // pred_check_branch
        %75 = sbr.rel (%p72) target = $region12
      $region11: #{tpu_custom_call.1} parent=5 // pred_region
        %s76 = ssub.s32 %s10, 1
      $region12: #{tpu_custom_call.1} parent=5 // pred_fallthru
        _
      %p77 = scmp.lt.s32.totalorder %s10, 2
      // Predicated region
      $region13: #{tpu_custom_call.1} parent=5 // pred_check
        %p78 = pneg %p77
      $region14: #{tpu_custom_call.1} parent=5 // pred_check_branch
        %80 = sbr.rel (%p78) target = $region16
      $region15: #{tpu_custom_call.1} parent=5 // pred_region
        // Predicated region
        $region17: #{tpu_custom_call.1} parent=15 // pred_check
          %p81 = pneg %p30
        $region18: #{tpu_custom_call.1} parent=15 // pred_check_branch
          %83 = sbr.rel (%p81) target = $region20
        $region19: #{tpu_custom_call.1} parent=15 // pred_region
          %p84 = scmp.lt.s32.totalorder %s10, 1
          %s85 = scalar_select %p84, %s10, 1
          %s86 = smul.addr %s85, 32
          %s87 = smul.addr %s86, 8
          %s88 = scalar_lea.vmem %s0, %s87
        $region20: #{tpu_custom_call.1} parent=15 // pred_fallthru
          _
      $region16: #{tpu_custom_call.1} parent=5 // pred_fallthru
        _
      %p89 = scmp.le.s32.totalorder 1, %s10
      %p90 = scmp.lt.s32.totalorder %s10, 3
      %p91 = pnand %p89, %p90
      %p92 = pneg %p91
      // Predicated region
      $region21: #{tpu_custom_call.1} parent=5 // pred_check
        _
      $region22: #{tpu_custom_call.1} parent=5 // pred_check_branch
        %94 = sbr.rel (%p91) target = $region24
      $region23: #{tpu_custom_call.1} parent=5 // pred_region
        %s95 = ssub.s32 %s10, 1
        %p96 = scmp.lt.s32.totalorder %s15, 1
        %s97 = scalar_select %p96, %s15, 1
        %s98 = smul.addr %s97, 32
        %s99 = smul.addr %s98, 8
        %s100 = scalar_lea.vmem %s0, %s99
        %p101 = pneg %p36
        %p102 = pneg %p33
        %p103 = pneg %p62
        %p104 = pneg %p59
        %s105 = sand.u32 %s49, 1
        %s106 = scalar_lea.sflag [#allocation3], %s105
        %s107 = sand.u32 %s49, 1
        %s108 = smul.addr %s107, 2
        %s109 = scalar_lea.vmem [#allocation2], %s108
        %p110 = scmp.lt.s32.totalorder %s15, 1
        %s111 = scalar_select %p110, %s15, 1
        %s112 = smul.addr %s111, 32
        %s113 = smul.addr %s112, 8
        %s114 = scalar_lea.vmem %s0, %s113
        %v115 = vld [vmem:[%s114] sm:$0xff]
        %v116 = vld [vmem:[%s114 + $0x8] sm:$0xff]
        %v117 = vld [vmem:[%s114 + $0x10] sm:$0xff]
        %v118 = vld [vmem:[%s114 + $0x18] sm:$0xff]
        %v119 = vld [vmem:[%s114 + $0x20] sm:$0xff]
        %v120 = vld [vmem:[%s114 + $0x28] sm:$0xff]
        %v121 = vld [vmem:[%s114 + $0x30] sm:$0xff]
        %v122 = vld [vmem:[%s114 + $0x38] sm:$0xff]
        %v123 = vld [vmem:[%s114 + $0x40] sm:$0xff]
        %v124 = vld [vmem:[%s114 + $0x48] sm:$0xff]
        %v125 = vld [vmem:[%s114 + $0x50] sm:$0xff]
        %v126 = vld [vmem:[%s114 + $0x58] sm:$0xff]
        %v127 = vld [vmem:[%s114 + $0x60] sm:$0xff]
        %v128 = vld [vmem:[%s114 + $0x68] sm:$0xff]
        %v129 = vld [vmem:[%s114 + $0x70] sm:$0xff]
        %v130 = vld [vmem:[%s114 + $0x78] sm:$0xff]
        %v131 = vld [vmem:[%s114 + $0x80] sm:$0xff]
        %v132 = vld [vmem:[%s114 + $0x88] sm:$0xff]
        %v133 = vld [vmem:[%s114 + $0x90] sm:$0xff]
        %v134 = vld [vmem:[%s114 + $0x98] sm:$0xff]
        %v135 = vld [vmem:[%s114 + $0xa0] sm:$0xff]
        %v136 = vld [vmem:[%s114 + $0xa8] sm:$0xff]
        %v137 = vld [vmem:[%s114 + $0xb0] sm:$0xff]
        %v138 = vld [vmem:[%s114 + $0xb8] sm:$0xff]
        %v139 = vld [vmem:[%s114 + $0xc0] sm:$0xff]
        %v140 = vld [vmem:[%s114 + $0xc8] sm:$0xff]
        %v141 = vld [vmem:[%s114 + $0xd0] sm:$0xff]
        %v142 = vld [vmem:[%s114 + $0xd8] sm:$0xff]
        %v143 = vld [vmem:[%s114 + $0xe0] sm:$0xff]
        %v144 = vld [vmem:[%s114 + $0xe8] sm:$0xff]
        %v145 = vld [vmem:[%s114 + $0xf0] sm:$0xff]
        %v146 = vld [vmem:[%s114 + $0xf8] sm:$0xff]
        %vm147 = vcmask 31744
        %v148 = vsel %vm147, %v115, 0.0
        %v149 = vsel %vm147, %v116, 0.0
        %v150 = vadd.f32 %v148, %v149
        %v151 = vsel %vm147, %v117, 0.0
        %v152 = vadd.f32 %v150, %v151
        %v153 = vsel %vm147, %v118, 0.0
        %v154 = vadd.f32 %v152, %v153
        %v155 = vsel %vm147, %v119, 0.0
        %v156 = vadd.f32 %v154, %v155
        %v157 = vsel %vm147, %v120, 0.0
        %v158 = vadd.f32 %v156, %v157
        %v159 = vsel %vm147, %v121, 0.0
        %v160 = vadd.f32 %v158, %v159
        %v161 = vsel %vm147, %v122, 0.0
        %v162 = vadd.f32 %v160, %v161
        %v163 = vsel %vm147, %v123, 0.0
        %v164 = vadd.f32 %v162, %v163
        %v165 = vsel %vm147, %v124, 0.0
        %v166 = vadd.f32 %v164, %v165
        %v167 = vsel %vm147, %v125, 0.0
        %v168 = vadd.f32 %v166, %v167
        %v169 = vsel %vm147, %v126, 0.0
        %v170 = vadd.f32 %v168, %v169
        %v171 = vsel %vm147, %v127, 0.0
        %v172 = vadd.f32 %v170, %v171
        %v173 = vsel %vm147, %v128, 0.0
        %v174 = vadd.f32 %v172, %v173
        %v175 = vsel %vm147, %v129, 0.0
        %v176 = vadd.f32 %v174, %v175
        %v177 = vsel %vm147, %v130, 0.0
        %v178 = vadd.f32 %v176, %v177
        %v179 = vsel %vm147, %v131, 0.0
        %v180 = vadd.f32 %v178, %v179
        %v181 = vsel %vm147, %v132, 0.0
        %v182 = vadd.f32 %v180, %v181
        %v183 = vsel %vm147, %v133, 0.0
        %v184 = vadd.f32 %v182, %v183
        %v185 = vsel %vm147, %v134, 0.0
        %v186 = vadd.f32 %v184, %v185
        %v187 = vsel %vm147, %v135, 0.0
        %v188 = vadd.f32 %v186, %v187
        %v189 = vsel %vm147, %v136, 0.0
        %v190 = vadd.f32 %v188, %v189
        %v191 = vsel %vm147, %v137, 0.0
        %v192 = vadd.f32 %v190, %v191
        %v193 = vsel %vm147, %v138, 0.0
        %v194 = vadd.f32 %v192, %v193
        %v195 = vsel %vm147, %v139, 0.0
        %v196 = vadd.f32 %v194, %v195
        %v197 = vsel %vm147, %v140, 0.0
        %v198 = vadd.f32 %v196, %v197
        %v199 = vsel %vm147, %v141, 0.0
        %v200 = vadd.f32 %v198, %v199
        %v201 = vsel %vm147, %v142, 0.0
        %v202 = vadd.f32 %v200, %v201
        %v203 = vsel %vm147, %v143, 0.0
        %v204 = vadd.f32 %v202, %v203
        %v205 = vsel %vm147, %v144, 0.0
        %v206 = vadd.f32 %v204, %v205
        %v207 = vsel %vm147, %v145, 0.0
        %v208 = vadd.f32 %v206, %v207
        %v209 = vsel %vm147, %v146, 0.0
        %v210 = vadd.f32 %v208, %v209
        %v211 = vrot.slane %v210, 4
        %v212 = vadd.f32 %v210, %v211
        %v213 = vrot.slane %v212, 2
        %v214 = vadd.f32 %v212, %v213
        %v215 = vrot.slane %v214, 1
        %v216 = vadd.f32 %v214, %v215
        %vm217 = vcmask 24576
        %218 = vst.msk [vmem:[%s109] sm:$0x1] %vm217, %v216
        %v219 = vmul.f32 %v115, %v115
        %v220 = vmul.f32 %v116, %v116
        %v221 = vmul.f32 %v117, %v117
        %v222 = vmul.f32 %v118, %v118
        %v223 = vmul.f32 %v119, %v119
        %v224 = vmul.f32 %v120, %v120
        %v225 = vmul.f32 %v121, %v121
        %v226 = vmul.f32 %v122, %v122
        %v227 = vmul.f32 %v123, %v123
        %v228 = vmul.f32 %v124, %v124
        %v229 = vmul.f32 %v125, %v125
        %v230 = vmul.f32 %v126, %v126
        %v231 = vmul.f32 %v127, %v127
        %v232 = vmul.f32 %v128, %v128
        %v233 = vmul.f32 %v129, %v129
        %v234 = vmul.f32 %v130, %v130
        %v235 = vmul.f32 %v131, %v131
        %v236 = vmul.f32 %v132, %v132
        %v237 = vmul.f32 %v133, %v133
        %v238 = vmul.f32 %v134, %v134
        %v239 = vmul.f32 %v135, %v135
        %v240 = vmul.f32 %v136, %v136
        %v241 = vmul.f32 %v137, %v137
        %v242 = vmul.f32 %v138, %v138
        %v243 = vmul.f32 %v139, %v139
        %v244 = vmul.f32 %v140, %v140
        %v245 = vmul.f32 %v141, %v141
        %v246 = vmul.f32 %v142, %v142
        %v247 = vmul.f32 %v143, %v143
        %v248 = vmul.f32 %v144, %v144
        %v249 = vmul.f32 %v145, %v145
        %v250 = vmul.f32 %v146, %v146
        %v251 = vsel %vm147, %v219, 0.0
        %v252 = vsel %vm147, %v220, 0.0
        %v253 = vadd.f32 %v251, %v252
        %v254 = vsel %vm147, %v221, 0.0
        %v255 = vadd.f32 %v253, %v254
        %v256 = vsel %vm147, %v222, 0.0
        %v257 = vadd.f32 %v255, %v256
        %v258 = vsel %vm147, %v223, 0.0
        %v259 = vadd.f32 %v257, %v258
        %v260 = vsel %vm147, %v224, 0.0
        %v261 = vadd.f32 %v259, %v260
        %v262 = vsel %vm147, %v225, 0.0
        %v263 = vadd.f32 %v261, %v262
        %v264 = vsel %vm147, %v226, 0.0
        %v265 = vadd.f32 %v263, %v264
        %v266 = vsel %vm147, %v227, 0.0
        %v267 = vadd.f32 %v265, %v266
        %v268 = vsel %vm147, %v228, 0.0
        %v269 = vadd.f32 %v267, %v268
        %v270 = vsel %vm147, %v229, 0.0
        %v271 = vadd.f32 %v269, %v270
        %v272 = vsel %vm147, %v230, 0.0
        %v273 = vadd.f32 %v271, %v272
        %v274 = vsel %vm147, %v231, 0.0
        %v275 = vadd.f32 %v273, %v274
        %v276 = vsel %vm147, %v232, 0.0
        %v277 = vadd.f32 %v275, %v276
        %v278 = vsel %vm147, %v233, 0.0
        %v279 = vadd.f32 %v277, %v278
        %v280 = vsel %vm147, %v234, 0.0
        %v281 = vadd.f32 %v279, %v280
        %v282 = vsel %vm147, %v235, 0.0
        %v283 = vadd.f32 %v281, %v282
        %v284 = vsel %vm147, %v236, 0.0
        %v285 = vadd.f32 %v283, %v284
        %v286 = vsel %vm147, %v237, 0.0
        %v287 = vadd.f32 %v285, %v286
        %v288 = vsel %vm147, %v238, 0.0
        %v289 = vadd.f32 %v287, %v288
        %v290 = vsel %vm147, %v239, 0.0
        %v291 = vadd.f32 %v289, %v290
        %v292 = vsel %vm147, %v240, 0.0
        %v293 = vadd.f32 %v291, %v292
        %v294 = vsel %vm147, %v241, 0.0
        %v295 = vadd.f32 %v293, %v294
        %v296 = vsel %vm147, %v242, 0.0
        %v297 = vadd.f32 %v295, %v296
        %v298 = vsel %vm147, %v243, 0.0
        %v299 = vadd.f32 %v297, %v298
        %v300 = vsel %vm147, %v244, 0.0
        %v301 = vadd.f32 %v299, %v300
        %v302 = vsel %vm147, %v245, 0.0
        %v303 = vadd.f32 %v301, %v302
        %v304 = vsel %vm147, %v246, 0.0
        %v305 = vadd.f32 %v303, %v304
        %v306 = vsel %vm147, %v247, 0.0
        %v307 = vadd.f32 %v305, %v306
        %v308 = vsel %vm147, %v248, 0.0
        %v309 = vadd.f32 %v307, %v308
        %v310 = vsel %vm147, %v249, 0.0
        %v311 = vadd.f32 %v309, %v310
        %v312 = vsel %vm147, %v250, 0.0
        %v313 = vadd.f32 %v311, %v312
        %v314 = vrot.slane %v313, 4
        %v315 = vadd.f32 %v313, %v314
        %v316 = vrot.slane %v315, 2
        %v317 = vadd.f32 %v315, %v316
        %v318 = vrot.slane %v317, 1
        %v319 = vadd.f32 %v317, %v318
        %320 = vst.msk [vmem:[%s109 + $0x1] sm:$0x1] %vm217, %v319
        %s321 = sand.u32 %s49, 1
        %s322 = scalar_lea.sflag [#allocation3], %s321
        %s323 = sand.u32 %s49, 1
        %s324 = smul.addr %s323, 2
        %s325 = scalar_lea.vmem [#allocation2], %s324
        // Predicated region
        $region25: #{tpu_custom_call.1} parent=23 // pred_check
          %p326 = pneg %p59
        $region26: #{tpu_custom_call.1} parent=23 // pred_check_branch
          %328 = sbr.rel (%p326) target = $region28
        $region27: #{tpu_custom_call.1} parent=23 // pred_region
          %s330 = ssub.s32 32, 32
          %331 = vsyncadd %s322, %s330
          %s332 = smul.addr %s15, 32
          %s333 = scalar_lea.hbm %s1, %s332
          %s335 = sshll.u32 %s325, 4
          %s336 = int_to_ptr.vmem [resolvable:$true] %s335
          %338 = dma.vmem_to_hbm [thread:$0]  %s336, 32, %s333, %s322
        $region28: #{tpu_custom_call.1} parent=23 // pred_fallthru
          _
      $region24: #{tpu_custom_call.1} parent=5 // pred_fallthru
        _
      %p339 = scmp.le.s32.totalorder 2, %s10
      // Predicated region
      $region29: #{tpu_custom_call.1} parent=5 // pred_check
        %p340 = pneg %p339
      $region30: #{tpu_custom_call.1} parent=5 // pred_check_branch
        %342 = sbr.rel (%p340) target = $region32
      $region31: #{tpu_custom_call.1} parent=5 // pred_region
        %s343 = ssub.s32 %s10, 2
        // Predicated region
        $region33: #{tpu_custom_call.1} parent=31 // pred_check
          %p344 = pneg %p65
        $region34: #{tpu_custom_call.1} parent=31 // pred_check_branch
          %346 = sbr.rel (%p344) target = $region36
        $region35: #{tpu_custom_call.1} parent=31 // pred_region
          %s347 = sand.u32 %s50, 1
          %s348 = scalar_lea.sflag [#allocation3], %s347
          %s349 = sand.u32 %s50, 1
          %s350 = smul.addr %s349, 2
          %s351 = scalar_lea.vmem [#allocation2], %s350
          %352 = dma.done %s348, 32
        $region36: #{tpu_custom_call.1} parent=31 // pred_fallthru
          _
      $region32: #{tpu_custom_call.1} parent=5 // pred_fallthru
        _
    $region6: #{tpu_custom_call.1} parent=1 // loop_footer
      %s14 = sadd.s32 1, %s10
    $region7: #{tpu_custom_call.1} parent=1 // loop_footer_branch
      %9 = sbr.rel target = $region3
    $region8: #{tpu_custom_call.1} parent=1 // loop_exit
      _
    %353 = vsyncpa [#allocation3], 1
    %s354 = scalar_lea.sflag [#allocation3], 1
    %355 = vsyncpa %s354, 1

</llo_original>
